<compile_context>
chip_gen: v7x
topology: tpu7x:2x2x1
jax: 0.10.0
libtpu: 0.0.40
codegen_flags: <defaults>
</compile_context>

<pallas_src>
import math

import jax
import jax.numpy as jnp
from jax import lax
from jax.experimental import pallas as pl
from jax.experimental.pallas import tpu as pltpu


def _round_up(a, b):
    return (a + b - 1) // b * b


def _choose_cols(n):
    """Pick a copy-free 2-D factorization (rows=n//cols, cols) of the flat input.

    Returns (cols, needs_pad). needs_pad=True means no acceptable divisor of n
    exists and the wrapper must pad the flattened inputs (rare; e.g. primes).
    """
    # Fast path: lane-aligned flat reshape (zero lane/sublane padding waste).
    for c in (512, 256, 128):
        if n % c == 0:
            return c, False
    # Ragged path: search divisors of n for a lane-efficient full-width column
    # count.  Lane/sublane padding does NOT add HBM traffic (only VMEM / VPU /
    # EUP inflation), so >=0.5 efficiency keeps the kernel HBM-bound.
    best_c, best_eff = None, 0.0
    for d in range(1, math.isqrt(n) + 1):
        if n % d:
            continue
        for c in (d, n // d):
            if not 96 <= c <= 1024:
                continue
            r = n // c
            lane_eff = c / _round_up(c, 128)
            sub_eff = min(r, 64) / min(_round_up(r, 8), 64)
            eff = lane_eff * sub_eff
            if eff > best_eff or (eff == best_eff and c > (best_c or 0)):
                best_eff, best_c = eff, c
    if best_c is not None and best_eff >= 0.5:
        return best_c, False
    return 128, True


def _build_kernel(*, log, log_eps, log_fac, distance, fuse_log_ratio,
                  block_rows, cols, acc_rows, tiles_per_slice, valid_rows,
                  need_mask):
    g = block_rows // acc_rows

    def elementwise(x, y):
        x = x.astype(jnp.float32)
        y = y.astype(jnp.float32)
        if log:
            if log_fac != 1.0:
                x = x * jnp.float32(log_fac)
                y = y * jnp.float32(log_fac)
            if log_eps != 0.0:
                x = x + jnp.float32(log_eps)
                y = y + jnp.float32(log_eps)
            if fuse_log_ratio:
                # log(x) - log(y) == log(x / y) for x, y > 0; approx reciprocal
                # halves EUP pushes (only worth it when EUP binds: v7x + bf16).
                d = jnp.log(x * pl.reciprocal(y, approx=True))
            else:
                d = jnp.log(x) - jnp.log(y)
        else:
            d = x - y
        if distance == "L1":
            return jnp.abs(d)
        return d * d

    def kernel(x_ref, y_ref, o_ref, acc_ref):
        p = pl.program_id(0)
        i = pl.program_id(1)

        @pl.when(i == 0)
        def _init():
            acc_ref[...] = jnp.zeros_like(acc_ref)

        # Unclamped tile id: fully out-of-range (index-clamped, duplicated)
        # tiles get a non-positive valid-row budget and are masked to zero.
        tile_row0 = (p * tiles_per_slice + i) * block_rows

        def tile_sum(masked):
            if masked:
                row_ids = lax.broadcasted_iota(jnp.int32, (acc_rows, cols), 0)

            def chunk(k, chunk_row0):
                if g == 1:
                    x, y = x_ref[...], y_ref[...]
                else:
                    off = pl.multiple_of(k * acc_rows, acc_rows)
                    x = x_ref[pl.ds(off, acc_rows), :]
                    y = y_ref[pl.ds(off, acc_rows), :]
                e = elementwise(x, y)
                if masked:
                    e = jnp.where(row_ids < valid_rows - chunk_row0, e,
                                  jnp.float32(0.0))
                return e

            if g == 1:
                return chunk(0, tile_row0)

            def body(k, part):
                return part + chunk(k, tile_row0 + k * acc_rows)

            return lax.fori_loop(
                0, g, body, jnp.zeros((acc_rows, cols), jnp.float32))

        if need_mask:
            tile_full = tile_row0 + block_rows <= valid_rows

            @pl.when(tile_full)
            def _full():
                acc_ref[...] += tile_sum(False)

            @pl.when(jnp.logical_not(tile_full))
            def _partial():
                acc_ref[...] += tile_sum(True)
        else:
            acc_ref[...] += tile_sum(False)

        # One cross-lane/sublane reduce per slice -> SMEM scalar.
        @pl.when(i == tiles_per_slice - 1)
        def _flush():
            o_ref[0, 0] = jnp.sum(acc_ref[...])

    return kernel


def stft_magnitude_loss(x_mag, y_mag, *, log=True, log_eps=0.0, log_fac=1.0,
                        distance="L1", reduction="mean",
                        tile_bytes=4 * 2**20, num_parallel=2,
                        fuse_log_ratio=False):
    assert x_mag.shape == y_mag.shape
    assert x_mag.dtype == y_mag.dtype
    if distance not in ("L1", "L2"):
        raise ValueError(f"Invalid distance: '{distance}'.")
    if reduction not in ("mean", "sum"):
        raise ValueError(f"Unsupported reduction: '{reduction}'.")

    n_elems = int(x_mag.size)
    assert n_elems > 0
    itemsize = jnp.dtype(x_mag.dtype).itemsize

    cols, needs_pad = _choose_cols(n_elems)

    xf = jnp.ravel(x_mag)   # reshape only: no data movement
    yf = jnp.ravel(y_mag)
    if needs_pad:
        # TODO(synk): rare slow path (e.g. prime numel) — materializes one
        # extra copy of each input.  Identical fill => zero loss contribution.
        padded = _round_up(n_elems, cols)
        xf = jnp.pad(xf, (0, padded - n_elems), constant_values=1.0)
        yf = jnp.pad(yf, (0, padded - n_elems), constant_values=1.0)
        rows = padded // cols
    else:
        rows = n_elems // cols
    x2 = xf.reshape(rows, cols)
    y2 = yf.reshape(rows, cols)

    cpad = _round_up(cols, 128)

    # ~4 MiB per-input tile (per buffer): amortizes per-grid-step overhead to a
    # few percent of step time on all of v5e / v6e / v7x.
    tr_budget = max(32, (int(tile_bytes) // (cpad * itemsize)) // 32 * 32)
    block_rows = rows if rows <= tr_budget else tr_budget

    # Chunk / accumulator rows: small enough that the per-chunk partial sum is
    # carried in vregs (<= 16 vregs) instead of round-tripping through VMEM.
    min_rows = 16 if itemsize < 4 else 8   # bf16 vregs pack (16, 128)
    acc_rows = block_rows
    for a in (64, 32, 16, 8):
        if a >= min_rows and block_rows % a == 0 and a * cpad <= 16384:
            acc_rows = a
            break

    total_tiles = pl.cdiv(rows, block_rows)
    p_slices = num_parallel if (num_parallel > 1 and total_tiles >= 8) else 1
    tiles_per_slice = pl.cdiv(total_tiles, p_slices)
    need_mask = not (rows % block_rows == 0
                     and p_slices * tiles_per_slice == total_tiles)

    kernel = _build_kernel(
        log=log, log_eps=float(log_eps), log_fac=float(log_fac),
        distance=distance, fuse_log_ratio=bool(fuse_log_ratio and log),
        block_rows=block_rows, cols=cols, acc_rows=acc_rows,
        tiles_per_slice=tiles_per_slice, valid_rows=rows, need_mask=need_mask)

    last_tile = total_tiles - 1

    def in_map(p, i):
        # Clamp so no block origin lies fully outside the array; the kernel
        # masks the (at most one) duplicated trailing tile to zero.
        return (jnp.minimum(p * tiles_per_slice + i, last_tile), 0)

    sub = 16 if itemsize < 4 else 8
    tile_vmem = _round_up(block_rows, sub) * cpad * itemsize
    acc_vmem = _round_up(acc_rows, 8) * cpad * 4
    # 2 inputs x 2 buffers x tile + accumulator + headroom; floor 32 MiB, cap
    # 64 MiB so it also fits v7x's 64 MiB VMEM per TensorCore.
    vmem_limit = int(min(64 * 2**20,
                         max(32 * 2**20, 4 * tile_vmem + acc_vmem + 8 * 2**20)))

    partials = pl.pallas_call(
        kernel,
        out_shape=jax.ShapeDtypeStruct((p_slices, 1), jnp.float32),
        grid_spec=pltpu.PrefetchScalarGridSpec(
            num_scalar_prefetch=0,
            grid=(p_slices, tiles_per_slice),
            in_specs=[
                pl.BlockSpec((block_rows, cols), in_map),
                pl.BlockSpec((block_rows, cols), in_map),
            ],
            out_specs=pl.BlockSpec((1, 1), lambda p, i: (p, 0),
                                   memory_space=pltpu.MemorySpace.SMEM),
            scratch_shapes=[pltpu.VMEM((acc_rows, cols), jnp.float32)],
        ),
        compiler_params=pltpu.CompilerParams(
            dimension_semantics=("parallel", "arbitrary"),
            vmem_limit_bytes=vmem_limit,
        ),
    )(x2, y2)

    total = jnp.sum(partials)
    if reduction == "mean":
        return total / jnp.float32(n_elems)
    return total


def _reference(x_mag, y_mag, *, log=True, log_eps=0.0, log_fac=1.0,
               distance="L1", reduction="mean"):
    x = jnp.asarray(x_mag, jnp.float32)
    y = jnp.asarray(y_mag, jnp.float32)
    if log:
        x = jnp.log(log_fac * x + log_eps)
        y = jnp.log(log_fac * y + log_eps)
    e = jnp.abs(x - y) if distance == "L1" else (x - y) ** 2
    return jnp.mean(e) if reduction == "mean" else jnp.sum(e)


if __name__ == "__main__":
    key = jax.random.PRNGKey(0)
    k1x, k1y, k2x, k2y, k3x, k3y = jax.random.split(key, 6)

    # 1) Small STFT-magnitude-like input, lane-aligned zero-copy fast path.
    x1 = jax.random.uniform(k1x, (2, 64, 128), jnp.float32, minval=0.05, maxval=4.0)
    y1 = jax.random.uniform(k1y, (2, 64, 128), jnp.float32, minval=0.05, maxval=4.0)
    out1 = jax.block_until_ready(stft_magnitude_loss(x1, y1))
    ref1 = _reference(x1, y1)
    assert jnp.allclose(out1, ref1, rtol=1e-5, atol=1e-6), (out1, ref1)

    # 2) Ragged (non-128-divisible) size: copy-free divisor layout with a
    #    full-width (escape-hatch) lane dim; also L2 / sum / log_fac / log_eps.
    x2 = jax.random.uniform(k2x, (3, 129, 67), jnp.float32, minval=0.05, maxval=4.0)
    y2 = jax.random.uniform(k2y, (3, 129, 67), jnp.float32, minval=0.05, maxval=4.0)
    out2 = jax.block_until_ready(
        stft_magnitude_loss(x2, y2, log=True, log_eps=1.0, log_fac=10.0,
                            distance="L2", reduction="sum"))
    ref2 = _reference(x2, y2, log=True, log_eps=1.0, log_fac=10.0,
                      distance="L2", reduction="sum")
    assert jnp.allclose(out2, ref2, rtol=1e-4, atol=1e-4), (out2, ref2)

    # 3) Multi-tile + parallel slices + partial-tile masking + chunked fori
    #    accumulation (small tile_bytes override forces the full structure).
    x3 = jax.random.uniform(k3x, (4, 500, 300), jnp.float32, minval=0.05, maxval=4.0)
    y3 = jax.random.uniform(k3y, (4, 500, 300), jnp.float32, minval=0.05, maxval=4.0)
    out3 = jax.block_until_ready(
        stft_magnitude_loss(x3, y3, tile_bytes=128 * 1024, num_parallel=2))
    ref3 = _reference(x3, y3)
    assert jnp.allclose(out3, ref3, rtol=2e-4, atol=1e-5), (out3, ref3)

    # 4) bf16 magnitudes ingested directly (compute stays f32 in-kernel).
    out4 = jax.block_until_ready(
        stft_magnitude_loss(x1.astype(jnp.bfloat16), y1.astype(jnp.bfloat16)))
    ref4 = _reference(x1.astype(jnp.bfloat16), y1.astype(jnp.bfloat16))
    assert jnp.allclose(out4, ref4, rtol=1e-4, atol=1e-5), (out4, ref4)

    print("KERNEL_OK")
</pallas_src>

<mosaic_0001>
module attributes {stable_mosaic.version = 11 : i64} {
  func.func @kernel(%arg0: i32, %arg1: i32, %arg2: memref<32x512xf32, #tpu.memory_space<vmem>>, %arg3: memref<32x512xf32, #tpu.memory_space<vmem>>, %arg4: memref<1x1xf32, #tpu.memory_space<smem>>, %arg5: memref<32x512xf32, #tpu.memory_space<vmem>>) attributes {dimension_semantics = [#tpu.dimension_semantics<parallel>, #tpu.dimension_semantics<arbitrary>], iteration_bounds = array<i64: 1, 1>, scalar_prefetch = 0 : i64, scratch_operands = 1 : i64, tpu.core_type = #tpu.core_type<tc>, window_params = [{transform_indices = @transform_0, window_bounds = array<i64: 32, 512>}, {transform_indices = @transform_1, window_bounds = array<i64: 32, 512>}, {transform_indices = @transform_2, window_bounds = array<i64: 1, 1>}]} {
    %c0_i32 = arith.constant 0 : i32
    %0 = arith.cmpi eq, %arg1, %c0_i32 : i32
    %1 = arith.extui %0 : i1 to i32
    %c0_i32_0 = arith.constant 0 : i32
    %2 = arith.cmpi ne, %1, %c0_i32_0 : i32
    scf.if %2 {
      %cst = arith.constant 0.000000e+00 : f32
      %15 = vector.broadcast %cst : f32 to vector<32x512xf32>
      %c0_10 = arith.constant 0 : index
      %c0_11 = arith.constant 0 : index
      %16 = vector.load %arg5[%c0_10, %c0_11] : memref<32x512xf32, #tpu.memory_space<vmem>>, vector<32x512xf32>
      tpu.vector_store %arg5[%c0_10, %c0_11], %15 {strides = array<i32>} : memref<32x512xf32, #tpu.memory_space<vmem>>, vector<32x512xf32>,
    } else {
    }
    %c0 = arith.constant 0 : index
    %c0_1 = arith.constant 0 : index
    %3 = vector.load %arg5[%c0, %c0_1] : memref<32x512xf32, #tpu.memory_space<vmem>>, vector<32x512xf32>
    %c0_2 = arith.constant 0 : index
    %c0_3 = arith.constant 0 : index
    %4 = vector.load %arg2[%c0_2, %c0_3] : memref<32x512xf32, #tpu.memory_space<vmem>>, vector<32x512xf32>
    %c0_4 = arith.constant 0 : index
    %c0_5 = arith.constant 0 : index
    %5 = vector.load %arg3[%c0_4, %c0_5] : memref<32x512xf32, #tpu.memory_space<vmem>>, vector<32x512xf32>
    %6 = math.log %4 : vector<32x512xf32>
    %7 = math.log %5 : vector<32x512xf32>
    %8 = arith.subf %6, %7 : vector<32x512xf32>
    %9 = math.absf %8 : vector<32x512xf32>
    %10 = arith.addf %3, %9 : vector<32x512xf32>
    %c0_6 = arith.constant 0 : index
    %c0_7 = arith.constant 0 : index
    %11 = vector.load %arg5[%c0_6, %c0_7] : memref<32x512xf32, #tpu.memory_space<vmem>>, vector<32x512xf32>
    tpu.vector_store %arg5[%c0_6, %c0_7], %10 {strides = array<i32>} : memref<32x512xf32, #tpu.memory_space<vmem>>, vector<32x512xf32>,
    %c0_i32_8 = arith.constant 0 : i32
    %12 = arith.cmpi eq, %arg1, %c0_i32_8 : i32
    %13 = arith.extui %12 : i1 to i32
    %c0_i32_9 = arith.constant 0 : i32
    %14 = arith.cmpi ne, %13, %c0_i32_9 : i32
    scf.if %14 {
      %c0_10 = arith.constant 0 : index
      %c0_11 = arith.constant 0 : index
      %15 = vector.load %arg5[%c0_10, %c0_11] : memref<32x512xf32, #tpu.memory_space<vmem>>, vector<32x512xf32>
      %16 = vector.shape_cast %15 : vector<32x512xf32> to vector<1x32x512xf32>
      %cst = arith.constant dense<0.000000e+00> : vector<1xf32>
      %17 = vector.multi_reduction <add>, %16, %cst [1, 2] : vector<1x32x512xf32> to vector<1xf32>
      %18 = vector.shape_cast %17 : vector<1xf32> to vector<1x1x1xf32>
      %19 = vector.extract %18[0, 0, 0] : f32 from vector<1x1x1xf32>
      %c0_12 = arith.constant 0 : index
      %c0_13 = arith.constant 0 : index
      %20 = memref.load %arg4[%c0_12, %c0_13] : memref<1x1xf32, #tpu.memory_space<smem>>
      memref.store %19, %arg4[%c0_12, %c0_13] : memref<1x1xf32, #tpu.memory_space<smem>>
    } else {
    }
    return
  }
  func.func @transform_0(%arg0: i32, %arg1: i32) -> (i32, i32) {
    %c1_i32 = arith.constant 1 : i32
    %0 = arith.muli %arg0, %c1_i32 : i32
    %1 = arith.addi %0, %arg1 : i32
    %c0_i32 = arith.constant 0 : i32
    %2 = arith.minsi %1, %c0_i32 : i32
    %c0_i32_0 = arith.constant 0 : i32
    %c0_i32_1 = arith.constant 0 : i32
    return %2, %c0_i32_0 : i32, i32
  }
  func.func @transform_1(%arg0: i32, %arg1: i32) -> (i32, i32) {
    %c1_i32 = arith.constant 1 : i32
    %0 = arith.muli %arg0, %c1_i32 : i32
    %1 = arith.addi %0, %arg1 : i32
    %c0_i32 = arith.constant 0 : i32
    %2 = arith.minsi %1, %c0_i32 : i32
    %c0_i32_0 = arith.constant 0 : i32
    %c0_i32_1 = arith.constant 0 : i32
    return %2, %c0_i32_0 : i32, i32
  }
  func.func @transform_2(%arg0: i32, %arg1: i32) -> (i32, i32) {
    %c0_i32 = arith.constant 0 : i32
    %c0_i32_0 = arith.constant 0 : i32
    return %arg0, %c0_i32 : i32, i32
  }
}

</mosaic_0001>

<llo_original>
// kernel: tpu_custom_call.1
$region0: #{tpu_custom_call.1}
  #allocation0 [shape = 'u32[]', space=smem, size = 0x4, offset = 0x4, fixed_abs, tag = 'smem constant byte address 0x4 - core index']
  #allocation1 [shape = 'u32[144,128]{1,0:T(1,128)}', space=vmem, size = 0x12000, scoped, tag = 'internal scratch']
  #allocation2 [shape = 'f32[32,512]{1,0:T(8,128)}', space=vmem, size = 0x10000, scoped, tag = 'scratch operand']
  %s0 = inlined_call_operand.hbm [shape: f32[32,512], index: 0, kind: input, shape index: {}]
  %s1 = inlined_call_operand.hbm [shape: f32[32,512], index: 1, kind: input, shape index: {}]
  %s2 = inlined_call_operand.hbm [shape: f32[1,1], index: 2, kind: output, shape index: {}]
  %s3 = sld [smem:[#allocation0]]
  $region34: #{tpu_custom_call.1} parent=0
    _
  %s5 = ssub.s32 1, %s3
  %s6 = scalar_select 0, %s5, %s3
  $region1: #{tpu_custom_call.1} parent=0
    #allocation3 [shape = 'u8[65536]{0}', space=vmem, size = 0x10000, scoped, tag = 'input window, operand 0, single buffered']
    #allocation4 [shape = 's32[1]{0}', space=sflag, size = 0x4, scoped, tag = 'scoped memory for tpu_custom_call.1']
    #allocation5 [shape = 's32[1]{0}', space=sflag, size = 0x4, scoped, tag = 'scoped memory for tpu_custom_call.1']
    #allocation6 [shape = 'u8[65536]{0}', space=vmem, size = 0x10000, scoped, tag = 'input window, operand 1, single buffered']
    #allocation7 [shape = 's32[1]{0}', space=sflag, size = 0x4, scoped, tag = 'scoped memory for tpu_custom_call.1']
    #allocation8 [shape = 'u8[512]{0}', space=smem, size = 0x200, scoped, tag = 'output window, operand 0, single buffered']
    %7 = vsyncpa [#allocation4], 0
    %8 = vsyncpa [#allocation7], 0
    %9 = vsyncpa [#allocation5], 0
    // Predicated region
    $region2: #{tpu_custom_call.1} parent=1 // pred_check
      _
    $region3: #{tpu_custom_call.1} parent=1 // pred_check_branch
      %11 = sbr.rel (0) target = $region5
    $region4: #{tpu_custom_call.1} parent=1 // pred_region
      %s12 = sadd.s32 0, 0
      %p13 = scmp.lt.s32.totalorder %s12, 0
      %s14 = scalar_select %p13, %s12, 0
      %s15 = smul.u32 4, %s14
      %s17 = ssub.s32 2048, 2048
      %18 = vsyncadd [#allocation4], %s17
      %s19 = smul.addr %s15, 4
      %s20 = smul.addr %s19, 128
      %s21 = scalar_lea.hbm %s0, %s20
      %s22 = sshll.u32 [#allocation3], 4
      %s23 = int_to_ptr.vmem [resolvable:$true] %s22
      %28 = dma.hbm_to_vmem [thread:$0]  %s21, 2048, %s23, [#allocation4], 512, 512, 32
    $region5: #{tpu_custom_call.1} parent=1 // pred_fallthru
      _
    // Predicated region
    $region6: #{tpu_custom_call.1} parent=1 // pred_check
      _
    $region7: #{tpu_custom_call.1} parent=1 // pred_check_branch
      %30 = sbr.rel (0) target = $region9
    $region8: #{tpu_custom_call.1} parent=1 // pred_region
      %s31 = sadd.s32 0, 0
      %p32 = scmp.lt.s32.totalorder %s31, 0
      %s33 = scalar_select %p32, %s31, 0
      %s34 = smul.u32 4, %s33
      %s36 = ssub.s32 2048, 2048
      %37 = vsyncadd [#allocation7], %s36
      %s38 = smul.addr %s34, 4
      %s39 = smul.addr %s38, 128
      %s40 = scalar_lea.hbm %s1, %s39
      %s41 = sshll.u32 [#allocation6], 4
      %s42 = int_to_ptr.vmem [resolvable:$true] %s41
      %47 = dma.hbm_to_vmem [thread:$0]  %s40, 2048, %s42, [#allocation7], 512, 512, 32
    $region9: #{tpu_custom_call.1} parent=1 // pred_fallthru
      _
    // Predicated region
    $region10: #{tpu_custom_call.1} parent=1 // pred_check
      _
    $region11: #{tpu_custom_call.1} parent=1 // pred_check_branch
      %49 = sbr.rel (0) target = $region13
    $region12: #{tpu_custom_call.1} parent=1 // pred_region
      %50 = dma.done [#allocation4], 2048
    $region13: #{tpu_custom_call.1} parent=1 // pred_fallthru
      _
    // Predicated region
    $region14: #{tpu_custom_call.1} parent=1 // pred_check
      _
    $region15: #{tpu_custom_call.1} parent=1 // pred_check_branch
      %52 = sbr.rel (0) target = $region17
    $region16: #{tpu_custom_call.1} parent=1 // pred_region
      %53 = dma.done [#allocation7], 2048
    $region17: #{tpu_custom_call.1} parent=1 // pred_fallthru
      _
    %s54 = sadd.s32 0, 0
    %p55 = scmp.lt.s32.totalorder %s54, 0
    %s56 = scalar_select %p55, %s54, 0
    %s57 = smul.u32 4, %s56
    %s58 = sadd.s32 0, 0
    %p59 = scmp.lt.s32.totalorder %s58, 0
    %s60 = scalar_select %p59, %s58, 0
    %s61 = smul.u32 4, %s60
    %p62 = scmp.eq.s32.totalorder 0, 0
    // Predicated region
    $region18: #{tpu_custom_call.1} parent=1 // pred_check
      %p63 = pneg %p62
    $region19: #{tpu_custom_call.1} parent=1 // pred_check_branch
      %65 = sbr.rel (%p63) target = $region21
    $region20: #{tpu_custom_call.1} parent=1 // pred_region
      %66 = vst [vmem:[#allocation2] sm:$0xff] 0.0
      %67 = vst [vmem:[#allocation2 + $0x8] sm:$0xff] 0.0
      %68 = vst [vmem:[#allocation2 + $0x10] sm:$0xff] 0.0
      %69 = vst [vmem:[#allocation2 + $0x18] sm:$0xff] 0.0
      %70 = vst [vmem:[#allocation2 + $0x20] sm:$0xff] 0.0
      %71 = vst [vmem:[#allocation2 + $0x28] sm:$0xff] 0.0
      %72 = vst [vmem:[#allocation2 + $0x30] sm:$0xff] 0.0
      %73 = vst [vmem:[#allocation2 + $0x38] sm:$0xff] 0.0
      %74 = vst [vmem:[#allocation2 + $0x40] sm:$0xff] 0.0
      %75 = vst [vmem:[#allocation2 + $0x48] sm:$0xff] 0.0
      %76 = vst [vmem:[#allocation2 + $0x50] sm:$0xff] 0.0
      %77 = vst [vmem:[#allocation2 + $0x58] sm:$0xff] 0.0
      %78 = vst [vmem:[#allocation2 + $0x60] sm:$0xff] 0.0
      %79 = vst [vmem:[#allocation2 + $0x68] sm:$0xff] 0.0
      %80 = vst [vmem:[#allocation2 + $0x70] sm:$0xff] 0.0
      %81 = vst [vmem:[#allocation2 + $0x78] sm:$0xff] 0.0
    $region21: #{tpu_custom_call.1} parent=1 // pred_fallthru
      _
    %v82 = vld [vmem:[#allocation2] sm:$0xff]
    %v83 = vld [vmem:[#allocation2 + $0x8] sm:$0xff]
    %v84 = vld [vmem:[#allocation2 + $0x10] sm:$0xff]
    %v85 = vld [vmem:[#allocation2 + $0x18] sm:$0xff]
    %v86 = vld [vmem:[#allocation2 + $0x20] sm:$0xff]
    %v87 = vld [vmem:[#allocation2 + $0x28] sm:$0xff]
    %v88 = vld [vmem:[#allocation2 + $0x30] sm:$0xff]
    %v89 = vld [vmem:[#allocation2 + $0x38] sm:$0xff]
    %v90 = vld [vmem:[#allocation2 + $0x40] sm:$0xff]
    %v91 = vld [vmem:[#allocation2 + $0x48] sm:$0xff]
    %v92 = vld [vmem:[#allocation2 + $0x50] sm:$0xff]
    %v93 = vld [vmem:[#allocation2 + $0x58] sm:$0xff]
    %v94 = vld [vmem:[#allocation2 + $0x60] sm:$0xff]
    %v95 = vld [vmem:[#allocation2 + $0x68] sm:$0xff]
    %v96 = vld [vmem:[#allocation2 + $0x70] sm:$0xff]
    %v97 = vld [vmem:[#allocation2 + $0x78] sm:$0xff]
    %v98 = vld [vmem:[#allocation3] sm:$0xff]
    %v99 = vld [vmem:[#allocation3 + $0x8] sm:$0xff]
    %v100 = vld [vmem:[#allocation3 + $0x10] sm:$0xff]
    %v101 = vld [vmem:[#allocation3 + $0x18] sm:$0xff]
    %v102 = vld [vmem:[#allocation3 + $0x20] sm:$0xff]
    %v103 = vld [vmem:[#allocation3 + $0x28] sm:$0xff]
    %v104 = vld [vmem:[#allocation3 + $0x30] sm:$0xff]
    %v105 = vld [vmem:[#allocation3 + $0x38] sm:$0xff]
    %v106 = vld [vmem:[#allocation3 + $0x40] sm:$0xff]
    %v107 = vld [vmem:[#allocation3 + $0x48] sm:$0xff]
    %v108 = vld [vmem:[#allocation3 + $0x50] sm:$0xff]
    %v109 = vld [vmem:[#allocation3 + $0x58] sm:$0xff]
    %v110 = vld [vmem:[#allocation3 + $0x60] sm:$0xff]
    %v111 = vld [vmem:[#allocation3 + $0x68] sm:$0xff]
    %v112 = vld [vmem:[#allocation3 + $0x70] sm:$0xff]
    %v113 = vld [vmem:[#allocation3 + $0x78] sm:$0xff]
    %v114 = vld [vmem:[#allocation6] sm:$0xff]
    %v115 = vld [vmem:[#allocation6 + $0x8] sm:$0xff]
    %v116 = vld [vmem:[#allocation6 + $0x10] sm:$0xff]
    %v117 = vld [vmem:[#allocation6 + $0x18] sm:$0xff]
    %v118 = vld [vmem:[#allocation6 + $0x20] sm:$0xff]
    %v119 = vld [vmem:[#allocation6 + $0x28] sm:$0xff]
    %v120 = vld [vmem:[#allocation6 + $0x30] sm:$0xff]
    %v121 = vld [vmem:[#allocation6 + $0x38] sm:$0xff]
    %v122 = vld [vmem:[#allocation6 + $0x40] sm:$0xff]
    %v123 = vld [vmem:[#allocation6 + $0x48] sm:$0xff]
    %v124 = vld [vmem:[#allocation6 + $0x50] sm:$0xff]
    %v125 = vld [vmem:[#allocation6 + $0x58] sm:$0xff]
    %v126 = vld [vmem:[#allocation6 + $0x60] sm:$0xff]
    %v127 = vld [vmem:[#allocation6 + $0x68] sm:$0xff]
    %v128 = vld [vmem:[#allocation6 + $0x70] sm:$0xff]
    %v129 = vld [vmem:[#allocation6 + $0x78] sm:$0xff]
    %v130 = vlog2.pop %v98
    %v131 = vmul.f32 %v130, 0.6931472
    %v132 = vlog2.pop %v99
    %v133 = vmul.f32 %v132, 0.6931472
    %v134 = vlog2.pop %v100
    %v135 = vmul.f32 %v134, 0.6931472
    %v136 = vlog2.pop %v101
    %v137 = vmul.f32 %v136, 0.6931472
    %v138 = vlog2.pop %v102
    %v139 = vmul.f32 %v138, 0.6931472
    %v140 = vlog2.pop %v103
    %v141 = vmul.f32 %v140, 0.6931472
    %v142 = vlog2.pop %v104
    %v143 = vmul.f32 %v142, 0.6931472
    %v144 = vlog2.pop %v105
    %v145 = vmul.f32 %v144, 0.6931472
    %v146 = vlog2.pop %v106
    %v147 = vmul.f32 %v146, 0.6931472
    %v148 = vlog2.pop %v107
    %v149 = vmul.f32 %v148, 0.6931472
    %v150 = vlog2.pop %v108
    %v151 = vmul.f32 %v150, 0.6931472
    %v152 = vlog2.pop %v109
    %v153 = vmul.f32 %v152, 0.6931472
    %v154 = vlog2.pop %v110
    %v155 = vmul.f32 %v154, 0.6931472
    %v156 = vlog2.pop %v111
    %v157 = vmul.f32 %v156, 0.6931472
    %v158 = vlog2.pop %v112
    %v159 = vmul.f32 %v158, 0.6931472
    %v160 = vlog2.pop %v113
    %v161 = vmul.f32 %v160, 0.6931472
    %v162 = vlog2.pop %v114
    %v163 = vmul.f32 %v162, 0.6931472
    %v164 = vlog2.pop %v115
    %v165 = vmul.f32 %v164, 0.6931472
    %v166 = vlog2.pop %v116
    %v167 = vmul.f32 %v166, 0.6931472
    %v168 = vlog2.pop %v117
    %v169 = vmul.f32 %v168, 0.6931472
    %v170 = vlog2.pop %v118
    %v171 = vmul.f32 %v170, 0.6931472
    %v172 = vlog2.pop %v119
    %v173 = vmul.f32 %v172, 0.6931472
    %v174 = vlog2.pop %v120
    %v175 = vmul.f32 %v174, 0.6931472
    %v176 = vlog2.pop %v121
    %v177 = vmul.f32 %v176, 0.6931472
    %v178 = vlog2.pop %v122
    %v179 = vmul.f32 %v178, 0.6931472
    %v180 = vlog2.pop %v123
    %v181 = vmul.f32 %v180, 0.6931472
    %v182 = vlog2.pop %v124
    %v183 = vmul.f32 %v182, 0.6931472
    %v184 = vlog2.pop %v125
    %v185 = vmul.f32 %v184, 0.6931472
    %v186 = vlog2.pop %v126
    %v187 = vmul.f32 %v186, 0.6931472
    %v188 = vlog2.pop %v127
    %v189 = vmul.f32 %v188, 0.6931472
    %v190 = vlog2.pop %v128
    %v191 = vmul.f32 %v190, 0.6931472
    %v192 = vlog2.pop %v129
    %v193 = vmul.f32 %v192, 0.6931472
    %v194 = vsub.f32 %v131, %v163
    %v195 = vsub.f32 %v133, %v165
    %v196 = vsub.f32 %v135, %v167
    %v197 = vsub.f32 %v137, %v169
    %v198 = vsub.f32 %v139, %v171
    %v199 = vsub.f32 %v141, %v173
    %v200 = vsub.f32 %v143, %v175
    %v201 = vsub.f32 %v145, %v177
    %v202 = vsub.f32 %v147, %v179
    %v203 = vsub.f32 %v149, %v181
    %v204 = vsub.f32 %v151, %v183
    %v205 = vsub.f32 %v153, %v185
    %v206 = vsub.f32 %v155, %v187
    %v207 = vsub.f32 %v157, %v189
    %v208 = vsub.f32 %v159, %v191
    %v209 = vsub.f32 %v161, %v193
    %v210 = vand.u32 2147483647, %v194
    %v211 = vand.u32 2147483647, %v195
    %v212 = vand.u32 2147483647, %v196
    %v213 = vand.u32 2147483647, %v197
    %v214 = vand.u32 2147483647, %v198
    %v215 = vand.u32 2147483647, %v199
    %v216 = vand.u32 2147483647, %v200
    %v217 = vand.u32 2147483647, %v201
    %v218 = vand.u32 2147483647, %v202
    %v219 = vand.u32 2147483647, %v203
    %v220 = vand.u32 2147483647, %v204
    %v221 = vand.u32 2147483647, %v205
    %v222 = vand.u32 2147483647, %v206
    %v223 = vand.u32 2147483647, %v207
    %v224 = vand.u32 2147483647, %v208
    %v225 = vand.u32 2147483647, %v209
    %v226 = vadd.f32 %v82, %v210
    %v227 = vadd.f32 %v83, %v211
    %v228 = vadd.f32 %v84, %v212
    %v229 = vadd.f32 %v85, %v213
    %v230 = vadd.f32 %v86, %v214
    %v231 = vadd.f32 %v87, %v215
    %v232 = vadd.f32 %v88, %v216
    %v233 = vadd.f32 %v89, %v217
    %v234 = vadd.f32 %v90, %v218
    %v235 = vadd.f32 %v91, %v219
    %v236 = vadd.f32 %v92, %v220
    %v237 = vadd.f32 %v93, %v221
    %v238 = vadd.f32 %v94, %v222
    %v239 = vadd.f32 %v95, %v223
    %v240 = vadd.f32 %v96, %v224
    %v241 = vadd.f32 %v97, %v225
    %242 = vst [vmem:[#allocation2] sm:$0xff] %v226
    %243 = vst [vmem:[#allocation2 + $0x8] sm:$0xff] %v227
    %244 = vst [vmem:[#allocation2 + $0x10] sm:$0xff] %v228
    %245 = vst [vmem:[#allocation2 + $0x18] sm:$0xff] %v229
    %246 = vst [vmem:[#allocation2 + $0x20] sm:$0xff] %v230
    %247 = vst [vmem:[#allocation2 + $0x28] sm:$0xff] %v231
    %248 = vst [vmem:[#allocation2 + $0x30] sm:$0xff] %v232
    %249 = vst [vmem:[#allocation2 + $0x38] sm:$0xff] %v233
    %250 = vst [vmem:[#allocation2 + $0x40] sm:$0xff] %v234
    %251 = vst [vmem:[#allocation2 + $0x48] sm:$0xff] %v235
    %252 = vst [vmem:[#allocation2 + $0x50] sm:$0xff] %v236
    %253 = vst [vmem:[#allocation2 + $0x58] sm:$0xff] %v237
    %254 = vst [vmem:[#allocation2 + $0x60] sm:$0xff] %v238
    %255 = vst [vmem:[#allocation2 + $0x68] sm:$0xff] %v239
    %256 = vst [vmem:[#allocation2 + $0x70] sm:$0xff] %v240
    %257 = vst [vmem:[#allocation2 + $0x78] sm:$0xff] %v241
    // Predicated region
    $region22: #{tpu_custom_call.1} parent=1 // pred_check
      %p258 = pneg %p62
    $region23: #{tpu_custom_call.1} parent=1 // pred_check_branch
      %260 = sbr.rel (%p258) target = $region25
    $region24: #{tpu_custom_call.1} parent=1 // pred_region
      %v261 = vld [vmem:[#allocation2] sm:$0xff]
      %v262 = vld [vmem:[#allocation2 + $0x8] sm:$0xff]
      %v263 = vld [vmem:[#allocation2 + $0x10] sm:$0xff]
      %v264 = vld [vmem:[#allocation2 + $0x18] sm:$0xff]
      %v265 = vld [vmem:[#allocation2 + $0x20] sm:$0xff]
      %v266 = vld [vmem:[#allocation2 + $0x28] sm:$0xff]
      %v267 = vld [vmem:[#allocation2 + $0x30] sm:$0xff]
      %v268 = vld [vmem:[#allocation2 + $0x38] sm:$0xff]
      %v269 = vld [vmem:[#allocation2 + $0x40] sm:$0xff]
      %v270 = vld [vmem:[#allocation2 + $0x48] sm:$0xff]
      %v271 = vld [vmem:[#allocation2 + $0x50] sm:$0xff]
      %v272 = vld [vmem:[#allocation2 + $0x58] sm:$0xff]
      %v273 = vld [vmem:[#allocation2 + $0x60] sm:$0xff]
      %v274 = vld [vmem:[#allocation2 + $0x68] sm:$0xff]
      %v275 = vld [vmem:[#allocation2 + $0x70] sm:$0xff]
      %v276 = vld [vmem:[#allocation2 + $0x78] sm:$0xff]
      %v277 = vadd.f32 %v261, %v262
      %v278 = vadd.f32 %v277, %v263
      %v279 = vadd.f32 %v278, %v264
      %v280 = vadd.f32 %v279, %v265
      %v281 = vadd.f32 %v280, %v266
      %v282 = vadd.f32 %v281, %v267
      %v283 = vadd.f32 %v282, %v268
      %v284 = vadd.f32 %v283, %v269
      %v285 = vadd.f32 %v284, %v270
      %v286 = vadd.f32 %v285, %v271
      %v287 = vadd.f32 %v286, %v272
      %v288 = vadd.f32 %v287, %v273
      %v289 = vadd.f32 %v288, %v274
      %v290 = vadd.f32 %v289, %v275
      %v291 = vadd.f32 %v290, %v276
      %292 = vadd.xlane.f32.xlu0 %v291
      %v293 = vpop.xlane.xlu0 %292
      %v294 = vrot.slane %v293, 4
      %v295 = vadd.f32 %v293, %v294
      %v296 = vrot.slane %v295, 2
      %v297 = vadd.f32 %v295, %v296
      %v298 = vrot.slane %v297, 1
      %v299 = vadd.f32 %v297, %v298
      %s300 = vtos %v299
      %s301 = scalar_lea.smem [#allocation8], 0
      %302 = sst [smem:[%s301]] %s300
    $region25: #{tpu_custom_call.1} parent=1 // pred_fallthru
      _
    // Predicated region
    $region26: #{tpu_custom_call.1} parent=1 // pred_check
      _
    $region27: #{tpu_custom_call.1} parent=1 // pred_check_branch
      %304 = sbr.rel (0) target = $region29
    $region28: #{tpu_custom_call.1} parent=1 // pred_region
      %s306 = ssub.s32 16, 16
      %307 = vsyncadd [#allocation5], %s306
      %310 = dma.smem_to_hbm [#allocation8], 16, %s2, [#allocation5]
    $region29: #{tpu_custom_call.1} parent=1 // pred_fallthru
      _
    // Predicated region
    $region30: #{tpu_custom_call.1} parent=1 // pred_check
      _
    $region31: #{tpu_custom_call.1} parent=1 // pred_check_branch
      %312 = sbr.rel (0) target = $region33
    $region32: #{tpu_custom_call.1} parent=1 // pred_region
      %313 = dma.done [#allocation5], 16
    $region33: #{tpu_custom_call.1} parent=1 // pred_fallthru
      _
    %314 = sfence
    %315 = vsyncpa [#allocation4], 1
    %316 = vsyncpa [#allocation7], 1
    %317 = vsyncpa [#allocation5], 1

</llo_original>
